<compile_context>
chip_gen: v7x
topology: tpu7x:2x2x1
jax: 0.10.0
libtpu: 0.0.40
codegen_flags: <defaults>
</compile_context>

<pallas_src>
import math

import jax
import jax.numpy as jnp
from jax.experimental import pallas as pl
from jax.experimental.pallas import tpu as pltpu


def _dab_kernel(x_ref, w_ref, b_ref, s_ref, o_ref):
    # x_ref : (R, T)  input tile  (rows = folded batch*channel, lanes = HW)
    # w_ref : (R, R)  block-diagonal 1x1-conv weight, (out, in)
    # b_ref : (R, 1)  conv bias (tiled per folded batch)
    # s_ref : (R, 1)  precomputed ca_score + sa_score per row
    # o_ref : (R, T)  output tile
    x = x_ref[...]
    pa = jax.nn.sigmoid(
        jnp.dot(w_ref[...], x, preferred_element_type=jnp.float32) + b_ref[...])
    # out = x*ca + x*sa + x*pa == x * (pa + (ca + sa))   (fused, one multiply)
    o_ref[...] = (x * (pa + s_ref[...])).astype(o_ref.dtype)


def _vmem_capacity_bytes():
    try:
        return int(pltpu.get_tpu_info().vmem_capacity_bytes)
    except Exception:
        return 64 << 20  # conservative: v7x per-TensorCore physical VMEM


def _plan_tiles(BC, C, HW, itemsize):
    """Return (nb, R, T, vmem_limit): nb batches folded per row block,
    R = nb*C sublane rows per block, T lanes per tile."""
    # Fold batches so the sublane (row) block is a multiple of 8 (dense vregs).
    nb = 1 if C % 8 == 0 else 8 // math.gcd(C, 8)
    R = nb * C
    if R >= BC:                       # tiny input: one row block covers all rows
        nb = BC // C
        R = BC

    vmem_cap = _vmem_capacity_bytes()
    # Memory-bound kernel: biggest tile that keeps 2x(in) + 2x(out) buffers
    # plus the weight comfortably inside scoped VMEM on every generation.
    tile_budget = max(1 << 20, min(vmem_cap // 24, 4 << 20))
    t_cap = max(128, (tile_budget // (R * itemsize)) // 128 * 128)
    T = HW if HW <= t_cap else t_cap   # full-extent or a multiple of 128

    # Keep at least 2 grid steps so v7x's second TensorCore gets work.
    if pl.cdiv(BC, R) * pl.cdiv(HW, T) < 2 and HW > 128:
        T = pl.cdiv(pl.cdiv(HW, 2), 128) * 128

    # Explicit scoped-VMEM budget (v5e default is only 16 MiB; v7x phys 64 MiB).
    tile_bytes = R * T * itemsize
    w_bytes = R * R * itemsize
    vmem_need = 4 * tile_bytes + 2 * w_bytes + (4 << 20)
    vmem_limit = int(min(max(vmem_need, 32 << 20), (vmem_cap * 4) // 5))
    return nb, R, T, vmem_limit


@jax.jit
def dab_block_apply(x_nchw, params):
    """Apply one DABBlock. x_nchw: (B, C, H, W) float32."""
    w_dense, b_dense, w_conv, b_conv = params
    B, C, H, W = x_nchw.shape
    HW = H * W
    BC = B * C

    x = x_nchw.reshape(BC, HW)                       # free reshape, no transpose

    # Hoisted pooled CA/SA gates (only B*C work) in plain JAX.
    pooled = jnp.mean(x_nchw.reshape(B, C, HW), axis=2)          # (B, C)
    ca_score = jax.nn.sigmoid(pooled @ w_dense.T + b_dense)      # (B, C)
    sa_score = jax.nn.sigmoid(pooled)                            # (B, C)
    score = (ca_score + sa_score).reshape(BC, 1).astype(x.dtype)

    nb, R, T, vmem_limit = _plan_tiles(BC, C, HW, x.dtype.itemsize)

    # 1x1 conv as a (out, in) matmul; block-diagonal over the folded batches.
    # TODO(synk): for very large C (>=1024) on v7x, cast the weight (and x) to
    # bf16 to halve its VMEM/DMA footprint on the bf16-native MXU.
    wc = w_conv.reshape(C, C).astype(x.dtype)
    w_bd = jnp.kron(jnp.eye(nb, dtype=wc.dtype), wc)             # (R, R)
    b_bd = jnp.tile(b_conv.reshape(C, 1).astype(x.dtype), (nb, 1))   # (R, 1)

    grid = (pl.cdiv(BC, R), pl.cdiv(HW, T))

    out = pl.pallas_call(
        _dab_kernel,
        out_shape=jax.ShapeDtypeStruct((BC, HW), x.dtype),
        grid_spec=pltpu.PrefetchScalarGridSpec(
            num_scalar_prefetch=0,
            grid=grid,
            in_specs=[
                pl.BlockSpec((R, T), lambda ri, ti: (ri, ti)),
                pl.BlockSpec((R, R), lambda ri, ti: (0, 0)),
                pl.BlockSpec((R, 1), lambda ri, ti: (0, 0)),
                pl.BlockSpec((R, 1), lambda ri, ti: (ri, 0)),
            ],
            out_specs=pl.BlockSpec((R, T), lambda ri, ti: (ri, ti)),
        ),
        compiler_params=pltpu.CompilerParams(
            dimension_semantics=("parallel", "parallel"),
            vmem_limit_bytes=vmem_limit),
    )(x, w_bd, b_bd, score)

    return out.reshape(B, C, H, W)


def init_dab_params(key, in_channels):
    """Deterministic synthetic parameters for one DABBlock."""
    k1, k2, k3, k4 = jax.random.split(key, 4)
    c = in_channels
    w_dense = jax.random.normal(k1, (c, c), jnp.float32) * 0.1       # Linear (out, in)
    b_dense = jax.random.normal(k2, (c,), jnp.float32) * 0.1
    w_conv = jax.random.normal(k3, (c, c, 1, 1), jnp.float32) * 0.1  # 1x1 conv (out, in, 1, 1)
    b_conv = jax.random.normal(k4, (c,), jnp.float32) * 0.1
    return (w_dense, b_dense, w_conv, b_conv)


def dab_modules_apply(features, params_list):
    """DABModules.forward: apply the idx-th DABBlock to features[idx]."""
    return [dab_block_apply(f, p) for f, p in zip(features, params_list)]


def _dab_block_ref(x_nchw, params):
    """Pure-JAX reference of DABBlock.forward for validation."""
    w_dense, b_dense, w_conv, b_conv = params
    B, C, H, W = x_nchw.shape
    pooled = jnp.mean(x_nchw, axis=(2, 3))                           # (B, C)
    ca_score = jax.nn.sigmoid(pooled @ w_dense.T + b_dense)          # (B, C)
    CA = x_nchw * ca_score[:, :, None, None]
    sa_score = jax.nn.sigmoid(pooled)[:, :, None, None]
    SA = x_nchw * sa_score
    pa = jnp.einsum('bchw,oc->bohw', x_nchw, w_conv.reshape(C, C)) \
        + b_conv[None, :, None, None]
    PA = x_nchw * jax.nn.sigmoid(pa)
    return CA + SA + PA


if __name__ == "__main__":
    key = jax.random.PRNGKey(0)
    in_channels_list = [4, 8]
    feature_shapes = [(2, 4, 16, 16), (2, 8, 8, 8)]

    keys = jax.random.split(key, 2 * len(in_channels_list))
    features = [
        jax.random.normal(keys[i], shp, jnp.float32)
        for i, shp in enumerate(feature_shapes)
    ]
    params_list = [
        init_dab_params(keys[len(feature_shapes) + i], c)
        for i, c in enumerate(in_channels_list)
    ]

    outs = dab_modules_apply(features, params_list)
    outs = [jax.block_until_ready(o) for o in outs]

    # Cross-check against the plain-JAX reference.
    for f, p, o in zip(features, params_list, outs):
        ref = _dab_block_ref(f, p)
        assert o.shape == f.shape
        assert jnp.max(jnp.abs(o - ref)) < 1e-4, "mismatch vs reference"

    print("KERNEL_OK")
</pallas_src>

<mosaic_0001>
module attributes {stable_mosaic.version = 11 : i64} {
  func.func @_dab_kernel(%arg0: i32, %arg1: i32, %arg2: memref<8x128xf32, #tpu.memory_space<vmem>>, %arg3: memref<8x8xf32, #tpu.memory_space<vmem>>, %arg4: memref<8x1xf32, #tpu.memory_space<vmem>>, %arg5: memref<8x1xf32, #tpu.memory_space<vmem>>, %arg6: memref<8x128xf32, #tpu.memory_space<vmem>>) attributes {dimension_semantics = [#tpu.dimension_semantics<parallel>, #tpu.dimension_semantics<parallel>], iteration_bounds = array<i64: 1, 2>, scalar_prefetch = 0 : i64, scratch_operands = 0 : i64, tpu.core_type = #tpu.core_type<tc>, window_params = [{transform_indices = @transform_0, window_bounds = array<i64: 8, 128>}, {pipeline_mode = #tpu.pipeline_mode<synchronous>, transform_indices = @transform_1, window_bounds = array<i64: 8, 8>}, {pipeline_mode = #tpu.pipeline_mode<synchronous>, transform_indices = @transform_2, window_bounds = array<i64: 8, 1>}, {transform_indices = @transform_3, window_bounds = array<i64: 8, 1>}, {transform_indices = @transform_4, window_bounds = array<i64: 8, 128>}]} {
    %c0 = arith.constant 0 : index
    %c0_0 = arith.constant 0 : index
    %0 = vector.load %arg2[%c0, %c0_0] : memref<8x128xf32, #tpu.memory_space<vmem>>, vector<8x128xf32>
    %c0_1 = arith.constant 0 : index
    %c0_2 = arith.constant 0 : index
    %1 = vector.load %arg3[%c0_1, %c0_2] : memref<8x8xf32, #tpu.memory_space<vmem>>, vector<8x8xf32>
    %cst = arith.constant dense<0.000000e+00> : vector<8x128xf32>
    %2 = tpu.matmul %1, %0, %cst {dimension_numbers = #tpu.dot_dimension_numbers<[1], [0], [0], [1], [0, 0, 1, 1], [], []>} : vector<8x8xf32>, vector<8x128xf32>, vector<8x128xf32> -> vector<8x128xf32>
    %c0_3 = arith.constant 0 : index
    %c0_4 = arith.constant 0 : index
    %3 = vector.load %arg4[%c0_3, %c0_4] : memref<8x1xf32, #tpu.memory_space<vmem>>, vector<8x1xf32>
    %4 = vector.broadcast %3 : vector<8x1xf32> to vector<8x128xf32>
    %5 = arith.addf %2, %4 : vector<8x128xf32>
    %6 = arith.negf %5 : vector<8x128xf32>
    %7 = math.exp %6 : vector<8x128xf32>
    %cst_5 = arith.constant 1.000000e+00 : f32
    %8 = vector.broadcast %cst_5 : f32 to vector<8x128xf32>
    %9 = arith.addf %8, %7 : vector<8x128xf32>
    %10 = arith.divf %8, %9 : vector<8x128xf32>
    %c0_6 = arith.constant 0 : index
    %c0_7 = arith.constant 0 : index
    %11 = vector.load %arg5[%c0_6, %c0_7] : memref<8x1xf32, #tpu.memory_space<vmem>>, vector<8x1xf32>
    %12 = vector.broadcast %11 : vector<8x1xf32> to vector<8x128xf32>
    %13 = arith.addf %10, %12 : vector<8x128xf32>
    %14 = arith.mulf %0, %13 : vector<8x128xf32>
    %c0_8 = arith.constant 0 : index
    %c0_9 = arith.constant 0 : index
    %15 = vector.load %arg6[%c0_8, %c0_9] : memref<8x128xf32, #tpu.memory_space<vmem>>, vector<8x128xf32>
    tpu.vector_store %arg6[%c0_8, %c0_9], %14 {strides = array<i32>} : memref<8x128xf32, #tpu.memory_space<vmem>>, vector<8x128xf32>,
    return
  }
  func.func @transform_0(%arg0: i32, %arg1: i32) -> (i32, i32) {
    %c0_i32 = arith.constant 0 : i32
    return %arg0, %arg1 : i32, i32
  }
  func.func @transform_1(%arg0: i32, %arg1: i32) -> (i32, i32) {
    %c0_i32 = arith.constant 0 : i32
    %c0_i32_0 = arith.constant 0 : i32
    %c0_i32_1 = arith.constant 0 : i32
    return %c0_i32, %c0_i32_0 : i32, i32
  }
  func.func @transform_2(%arg0: i32, %arg1: i32) -> (i32, i32) {
    %c0_i32 = arith.constant 0 : i32
    %c0_i32_0 = arith.constant 0 : i32
    %c0_i32_1 = arith.constant 0 : i32
    return %c0_i32, %c0_i32_0 : i32, i32
  }
  func.func @transform_3(%arg0: i32, %arg1: i32) -> (i32, i32) {
    %c0_i32 = arith.constant 0 : i32
    %c0_i32_0 = arith.constant 0 : i32
    return %arg0, %c0_i32 : i32, i32
  }
  func.func @transform_4(%arg0: i32, %arg1: i32) -> (i32, i32) {
    %c0_i32 = arith.constant 0 : i32
    return %arg0, %arg1 : i32, i32
  }
}

</mosaic_0001>

<llo_original>
// kernel: dab_block_apply.1
$region0: #{dab_block_apply.1}
  #allocation0 [shape = 'u32[]', space=smem, size = 0x4, offset = 0x4, fixed_abs, tag = 'smem constant byte address 0x4 - core index']
  #allocation1 [shape = 'u32[144,128]{1,0:T(1,128)}', space=vmem, size = 0x12000, scoped, tag = 'internal scratch']
  %s0 = inlined_call_operand.vmem [shape: f32[8,256], index: 0, kind: input, shape index: {}]
  %s1 = inlined_call_operand.vmem [shape: f32[8,8], index: 1, kind: input, shape index: {}]
  %s2 = inlined_call_operand.vmem [shape: f32[8,1], index: 2, kind: input, shape index: {}]
  %s3 = inlined_call_operand.vmem [shape: f32[8,1], index: 3, kind: input, shape index: {}]
  %s4 = inlined_call_operand.vmem [shape: f32[8,256], index: 4, kind: output, shape index: {}]
  %s5 = sld [smem:[#allocation0]]
  $region49: #{dab_block_apply.1} parent=0
    _
  %s7 = ssub.s32 1, %s5
  %s8 = scalar_select 0, %s7, %s5
  loop: start=0, step=1, limit=4
  $region2: #{dab_block_apply.1} parent=0 // loop_pre_header
    _
  $region3: #{dab_block_apply.1} parent=0 // loop_header
    %s10 = sphi 0, %s14
    %p11 = scmp.ge.s32.totalorder %s10, 4
    %s17 = sphi 0, %s29
    %s18 = sphi 0, %s25
    %s19 = sphi 0, %s17
    %s20 = sphi 0, %s18
    %s21 = sphi 0, %s19
    %s22 = sphi 0, %s20
    %s34 = sphi 0, %s36
    %s37 = sphi 0, %s34
    %s38 = sphi 0, %s37
    %s54 = sphi 0, %s38
    %s58 = sphi 0, %s58
    %s60 = sphi 0, %s58
    %s61 = sphi 0, %s60
    %s75 = sphi 0, %s61
    %s79 = sphi 0, %s79
    %s81 = sphi 0, %s79
    %s82 = sphi 0, %s81
    %s96 = sphi 0, %s82
    %s102 = sphi 0, %s104
    %s105 = sphi 0, %s102
    %s106 = sphi 0, %s105
    %s122 = sphi 0, %s106
    %s130 = sphi 0, %s132
    %s133 = sphi 0, %s130
    %s134 = sphi 0, %s133
    %s150 = sphi 0, %s134
  $region4: #{dab_block_apply.1} parent=0 // loop_header_branch
    %13 = sbr.rel (%p11) target = $region8
  $region5: #{dab_block_apply.1} parent=0 // loop_body
    %s15 = ssub.s32 %s10, 1
    %s16 = ssub.s32 %s10, 2
    %s23 = sadd.s32 1, %s18
    %p24 = scmp.ge.s32.totalorder %s23, 2
    %s25 = scalar_select %p24, 0, %s23
    %s26 = sadd.s32 1, %s17
    %s27 = scalar_select %p24, %s26, %s17
    %p28 = scmp.ge.s32.totalorder %s27, 1
    %s29 = scalar_select %p28, 0, %s27
    %s30 = ssub.s32 %s17, %s29
    %s31 = ssub.s32 %s18, %s25
    %s32 = sor.u32 %s30, %s31
    %p33 = scmp.eq.s32.totalorder %s32, 0
    %s35 = sadd.s32 %s34, 1
    %s36 = scalar_select %p33, %s34, %s35
    %p39 = pneg %p33
    %p40 = scmp.eq.s32.totalorder %s10, 1
    %p41 = por %p39, %p40
    %p42 = scmp.ne.s32.totalorder %s34, %s37
    %p43 = scmp.eq.s32.totalorder %s10, 0
    %p44 = por %p42, %p43
    %p45 = scmp.ne.s32.totalorder %s34, %s37
    %p46 = scmp.eq.s32.totalorder %s15, 1
    %p47 = por %p45, %p46
    %p48 = scmp.ne.s32.totalorder %s37, %s38
    %p49 = scmp.eq.s32.totalorder %s15, 0
    %p50 = por %p48, %p49
    %p51 = scmp.ne.s32.totalorder %s37, %s38
    %p52 = scmp.eq.s32.totalorder %s16, 1
    %p53 = por %p51, %p52
    %p55 = scmp.ne.s32.totalorder %s38, %s54
    %p56 = scmp.eq.s32.totalorder %s16, 0
    %p57 = por %p55, %p56
    %s59 = sadd.s32 %s58, 1
    %p62 = scmp.eq.s32.totalorder %s10, 1
    %p63 = scmp.ne.s32.totalorder %s58, %s60
    %p64 = scmp.eq.s32.totalorder %s10, 0
    %p65 = por %p63, %p64
    %p66 = scmp.ne.s32.totalorder %s58, %s60
    %p67 = scmp.eq.s32.totalorder %s15, 1
    %p68 = por %p66, %p67
    %p69 = scmp.ne.s32.totalorder %s60, %s61
    %p70 = scmp.eq.s32.totalorder %s15, 0
    %p71 = por %p69, %p70
    %p72 = scmp.ne.s32.totalorder %s60, %s61
    %p73 = scmp.eq.s32.totalorder %s16, 1
    %p74 = por %p72, %p73
    %p76 = scmp.ne.s32.totalorder %s61, %s75
    %p77 = scmp.eq.s32.totalorder %s16, 0
    %p78 = por %p76, %p77
    %s80 = sadd.s32 %s79, 1
    %p83 = scmp.eq.s32.totalorder %s10, 1
    %p84 = scmp.ne.s32.totalorder %s79, %s81
    %p85 = scmp.eq.s32.totalorder %s10, 0
    %p86 = por %p84, %p85
    %p87 = scmp.ne.s32.totalorder %s79, %s81
    %p88 = scmp.eq.s32.totalorder %s15, 1
    %p89 = por %p87, %p88
    %p90 = scmp.ne.s32.totalorder %s81, %s82
    %p91 = scmp.eq.s32.totalorder %s15, 0
    %p92 = por %p90, %p91
    %p93 = scmp.ne.s32.totalorder %s81, %s82
    %p94 = scmp.eq.s32.totalorder %s16, 1
    %p95 = por %p93, %p94
    %p97 = scmp.ne.s32.totalorder %s82, %s96
    %p98 = scmp.eq.s32.totalorder %s16, 0
    %p99 = por %p97, %p98
    %s100 = ssub.s32 %s17, %s29
    %p101 = scmp.eq.s32.totalorder %s100, 0
    %s103 = sadd.s32 %s102, 1
    %s104 = scalar_select %p101, %s102, %s103
    %p107 = pneg %p101
    %p108 = scmp.eq.s32.totalorder %s10, 1
    %p109 = por %p107, %p108
    %p110 = scmp.ne.s32.totalorder %s102, %s105
    %p111 = scmp.eq.s32.totalorder %s10, 0
    %p112 = por %p110, %p111
    %p113 = scmp.ne.s32.totalorder %s102, %s105
    %p114 = scmp.eq.s32.totalorder %s15, 1
    %p115 = por %p113, %p114
    %p116 = scmp.ne.s32.totalorder %s105, %s106
    %p117 = scmp.eq.s32.totalorder %s15, 0
    %p118 = por %p116, %p117
    %p119 = scmp.ne.s32.totalorder %s105, %s106
    %p120 = scmp.eq.s32.totalorder %s16, 1
    %p121 = por %p119, %p120
    %p123 = scmp.ne.s32.totalorder %s106, %s122
    %p124 = scmp.eq.s32.totalorder %s16, 0
    %p125 = por %p123, %p124
    %s126 = ssub.s32 %s17, %s29
    %s127 = ssub.s32 %s18, %s25
    %s128 = sor.u32 %s126, %s127
    %p129 = scmp.eq.s32.totalorder %s128, 0
    %s131 = sadd.s32 %s130, 1
    %s132 = scalar_select %p129, %s130, %s131
    %p135 = pneg %p129
    %p136 = scmp.eq.s32.totalorder %s10, 1
    %p137 = por %p135, %p136
    %p138 = scmp.ne.s32.totalorder %s130, %s133
    %p139 = scmp.eq.s32.totalorder %s10, 0
    %p140 = por %p138, %p139
    %p141 = scmp.ne.s32.totalorder %s130, %s133
    %p142 = scmp.eq.s32.totalorder %s15, 1
    %p143 = por %p141, %p142
    %p144 = scmp.ne.s32.totalorder %s133, %s134
    %p145 = scmp.eq.s32.totalorder %s15, 0
    %p146 = por %p144, %p145
    %p147 = scmp.ne.s32.totalorder %s133, %s134
    %p148 = scmp.eq.s32.totalorder %s16, 1
    %p149 = por %p147, %p148
    %p151 = scmp.ne.s32.totalorder %s134, %s150
    %p152 = scmp.eq.s32.totalorder %s16, 0
    %p153 = por %p151, %p152
    %p154 = scmp.le.s32.totalorder 1, %s10
    %p155 = scmp.lt.s32.totalorder %s10, 3
    %p156 = pnand %p154, %p155
    %p157 = pneg %p156
    // Predicated region
    $region9: #{dab_block_apply.1} parent=5 // pred_check
      _
    $region10: #{dab_block_apply.1} parent=5 // pred_check_branch
      %159 = sbr.rel (%p156) target = $region12
    $region11: #{dab_block_apply.1} parent=5 // pred_region
      %s160 = ssub.s32 %s10, 1
      // Predicated region
      $region13: #{dab_block_apply.1} parent=11 // pred_check
        %p161 = pneg %p71
      $region14: #{dab_block_apply.1} parent=11 // pred_check_branch
        %163 = sbr.rel (%p161) target = $region16
      $region15: #{dab_block_apply.1} parent=11 // pred_region
        _
      $region16: #{dab_block_apply.1} parent=11 // pred_fallthru
        _
      // Predicated region
      $region17: #{dab_block_apply.1} parent=11 // pred_check
        %p164 = pneg %p92
      $region18: #{dab_block_apply.1} parent=11 // pred_check_branch
        %166 = sbr.rel (%p164) target = $region20
      $region19: #{dab_block_apply.1} parent=11 // pred_region
        _
      $region20: #{dab_block_apply.1} parent=11 // pred_fallthru
        _
      // Predicated region
      $region21: #{dab_block_apply.1} parent=11 // pred_check
        %p167 = pneg %p118
      $region22: #{dab_block_apply.1} parent=11 // pred_check_branch
        %169 = sbr.rel (%p167) target = $region24
      $region23: #{dab_block_apply.1} parent=11 // pred_region
        %p170 = scmp.lt.s32.totalorder %s19, 0
        %s171 = scalar_select %p170, %s19, 0
        %s172 = smul.addr %s171, 8
        %s173 = scalar_lea.vmem %s3, %s172
      $region24: #{dab_block_apply.1} parent=11 // pred_fallthru
        _
    $region12: #{dab_block_apply.1} parent=5 // pred_fallthru
      _
    %p174 = scmp.lt.s32.totalorder %s10, 2
    // Predicated region
    $region25: #{dab_block_apply.1} parent=5 // pred_check
      %p175 = pneg %p174
    $region26: #{dab_block_apply.1} parent=5 // pred_check_branch
      %177 = sbr.rel (%p175) target = $region28
    $region27: #{dab_block_apply.1} parent=5 // pred_region
      // Predicated region
      $region29: #{dab_block_apply.1} parent=27 // pred_check
        %p178 = pneg %p44
      $region30: #{dab_block_apply.1} parent=27 // pred_check_branch
        %180 = sbr.rel (%p178) target = $region32
      $region31: #{dab_block_apply.1} parent=27 // pred_region
        %p181 = scmp.lt.s32.totalorder %s17, 0
        %s182 = scalar_select %p181, %s17, 0
        %p183 = scmp.lt.s32.totalorder %s18, 1
        %s184 = scalar_select %p183, %s18, 1
        %s185 = smul.addr %s182, 2
        %s186 = sadd.s32 %s184, %s185
        %s187 = smul.addr %s186, 8
        %s188 = scalar_lea.vmem %s0, %s187
      $region32: #{dab_block_apply.1} parent=27 // pred_fallthru
        _
    $region28: #{dab_block_apply.1} parent=5 // pred_fallthru
      _
    %p189 = scmp.le.s32.totalorder 1, %s10
    %p190 = scmp.lt.s32.totalorder %s10, 3
    %p191 = pnand %p189, %p190
    %p192 = pneg %p191
    // Predicated region
    $region33: #{dab_block_apply.1} parent=5 // pred_check
      _
    $region34: #{dab_block_apply.1} parent=5 // pred_check_branch
      %194 = sbr.rel (%p191) target = $region36
    $region35: #{dab_block_apply.1} parent=5 // pred_region
      %s195 = ssub.s32 %s10, 1
      %p196 = scmp.lt.s32.totalorder %s19, 0
      %s197 = scalar_select %p196, %s19, 0
      %p198 = scmp.lt.s32.totalorder %s20, 1
      %s199 = scalar_select %p198, %s20, 1
      %s200 = smul.addr %s197, 2
      %s201 = sadd.s32 %s199, %s200
      %s202 = smul.addr %s201, 8
      %s203 = scalar_lea.vmem %s0, %s202
      %p204 = pneg %p50
      %p205 = pneg %p47
      %p206 = pneg %p71
      %p207 = pneg %p68
      %p208 = pneg %p92
      %p209 = pneg %p89
      %p210 = scmp.lt.s32.totalorder %s19, 0
      %s211 = scalar_select %p210, %s19, 0
      %s212 = smul.addr %s211, 8
      %s213 = scalar_lea.vmem %s3, %s212
      %p214 = pneg %p118
      %p215 = pneg %p115
      %p216 = pneg %p146
      %p217 = pneg %p143
      %p218 = scmp.lt.s32.totalorder %s19, 0
      %s219 = scalar_select %p218, %s19, 0
      %p220 = scmp.lt.s32.totalorder %s20, 1
      %s221 = scalar_select %p220, %s20, 1
      %s222 = smul.addr %s219, 2
      %s223 = sadd.s32 %s221, %s222
      %s224 = smul.addr %s223, 8
      %s225 = scalar_lea.vmem %s4, %s224
      %p226 = scmp.lt.s32.totalorder %s19, 0
      %s227 = scalar_select %p226, %s19, 0
      %p228 = scmp.lt.s32.totalorder %s20, 1
      %s229 = scalar_select %p228, %s20, 1
      %s230 = smul.addr %s227, 2
      %s231 = sadd.s32 %s229, %s230
      %s232 = smul.addr %s231, 8
      %s233 = scalar_lea.vmem %s0, %s232
      %p234 = scmp.lt.s32.totalorder %s19, 0
      %s235 = scalar_select %p234, %s19, 0
      %s236 = smul.addr %s235, 8
      %s237 = scalar_lea.vmem %s3, %s236
      %p238 = scmp.lt.s32.totalorder %s19, 0
      %s239 = scalar_select %p238, %s19, 0
      %p240 = scmp.lt.s32.totalorder %s20, 1
      %s241 = scalar_select %p240, %s20, 1
      %s242 = smul.addr %s239, 2
      %s243 = sadd.s32 %s241, %s242
      %s244 = smul.addr %s243, 8
      %s245 = scalar_lea.vmem %s4, %s244
      %v246 = vld [vmem:[%s233] sm:$0xff]
      %v247 = vld [vmem:[%s1] sm:$0xff]
      %v248 = vld [vmem:[%s2] sm:$0xff]
      %250 = vset.pattern.permute.xlu0 0
      %251 = vperm.xlu0 %250, %v248
      %v252 = vpop.permute.xlu0 %251
      %vm254 = vcmask 64512
      %v256 = vsel %vm254, %v247, 0
      %258 = vmatprep.subr.mxu0 0.0
      %259 = vmatpush1.msra.mxu0 %v246
      %260 = vmatprep.subr.mxu0 0.0
      %261 = vmatpush1.msra.mxu0 0.0
      %262 = vmatprep.subr.mxu0 0.0
      %263 = vmatpush1.msra.mxu0 0.0
      %264 = vmatprep.subr.mxu0 0.0
      %265 = vmatpush1.msra.mxu0 0.0
      %266 = vmatprep.subr.mxu0 0.0
      %267 = vmatpush1.msra.mxu0 0.0
      %268 = vmatprep.subr.mxu0 0.0
      %269 = vmatpush1.msra.mxu0 0.0
      %270 = vmatprep.subr.mxu0 0.0
      %271 = vmatpush1.msra.mxu0 0.0
      %272 = vmatprep.subr.mxu0 0.0
      %273 = vmatpush1.msra.mxu0 0.0
      %274 = vmatprep.subr.mxu0 0.0
      %275 = vmatpush1.msra.mxu0 0.0
      %276 = vmatprep.subr.mxu0 0.0
      %277 = vmatpush1.msra.mxu0 0.0
      %278 = vmatprep.subr.mxu0 0.0
      %279 = vmatpush1.msra.mxu0 0.0
      %280 = vmatprep.subr.mxu0 0.0
      %281 = vmatpush1.msra.mxu0 0.0
      %282 = vmatprep.subr.mxu0 0.0
      %283 = vmatpush1.msra.mxu0 0.0
      %284 = vmatprep.subr.mxu0 0.0
      %285 = vmatpush1.msra.mxu0 0.0
      %286 = vmatprep.subr.mxu0 0.0
      %287 = vmatpush1.msra.mxu0 0.0
      %288 = vmatprep.subr.mxu0 0.0
      %289 = vmatpush1.msra.mxu0 0.0
      %290 = vmatprep.subr.mxu0 0.0
      %291 = vmatpush1.msra.mxu0 0.0
      %292 = vmatprep.subr.mxu0 0.0
      %293 = vmatpush1.msra.mxu0 0.0
      %294 = vmatprep.subr.mxu0 0.0
      %295 = vmatpush1.msra.mxu0 0.0
      %296 = vmatprep.subr.mxu0 0.0
      %297 = vmatpush1.msra.mxu0 0.0
      %298 = vmatprep.subr.mxu0 0.0
      %299 = vmatpush1.msra.mxu0 0.0
      %300 = vmatprep.subr.mxu0 0.0
      %301 = vmatpush1.msra.mxu0 0.0
      %302 = vmatprep.subr.mxu0 0.0
      %303 = vmatpush1.msra.mxu0 0.0
      %304 = vmatprep.subr.mxu0 0.0
      %305 = vmatpush1.msra.mxu0 0.0
      %306 = vmatprep.subr.mxu0 0.0
      %307 = vmatpush1.msra.mxu0 0.0
      %308 = vmatprep.subr.mxu0 0.0
      %309 = vmatpush1.msra.mxu0 0.0
      %310 = vmatprep.subr.mxu0 0.0
      %311 = vmatpush1.msra.mxu0 0.0
      %312 = vmatprep.subr.mxu0 0.0
      %313 = vmatpush1.msra.mxu0 0.0
      %314 = vmatprep.subr.mxu0 0.0
      %315 = vmatpush1.msra.mxu0 0.0
      %316 = vmatprep.subr.mxu0 0.0
      %317 = vmatpush1.msra.mxu0 0.0
      %318 = vmatprep.subr.mxu0 0.0
      %319 = vmatpush1.msra.mxu0 0.0
      %320 = vmatprep.subr.mxu0 0.0
      %321 = vmatpush1.msra.mxu0 0.0
      %322 = vmatprep.mubr.f32.mxu0 0.0
      %323 = vmatmul.mubr.f32.gmra.mrb[0].mxu0 %v256
      %v324 = vpop.f32.mrb[0].mxu0
      %v325 = vadd.f32 %v252, %v324
      %v326 = vpop.f32.mrb[0].mxu0
      %327 = vdwg.mxu0
      %v328 = vxor.u32 %v325, 2147483648
      %v329 = vmul.f32 %v328, 1.442695
      %v330 = vpow.pop %v329
      %v331 = vadd.f32 %v330, 1.0
      %v332 = vrcp.pop %v331
      %v333 = vmul.f32 1.0, %v332
      %v334 = vld [vmem:[%s237] sm:$0xff]
      %336 = vset.pattern.permute.xlu0 0
      %337 = vperm.xlu0 %336, %v334
      %v338 = vpop.permute.xlu0 %337
      %v340 = vadd.f32 %v333, %v338
      %v341 = vmul.f32 %v246, %v340
      %342 = vst [vmem:[%s245] sm:$0xff] %v341
      %p343 = scmp.lt.s32.totalorder %s19, 0
      %s344 = scalar_select %p343, %s19, 0
      %p345 = scmp.lt.s32.totalorder %s20, 1
      %s346 = scalar_select %p345, %s20, 1
      %s347 = smul.addr %s344, 2
      %s348 = sadd.s32 %s346, %s347
      %s349 = smul.addr %s348, 8
      %s350 = scalar_lea.vmem %s4, %s349
      // Predicated region
      $region37: #{dab_block_apply.1} parent=35 // pred_check
        %p351 = pneg %p143
      $region38: #{dab_block_apply.1} parent=35 // pred_check_branch
        %353 = sbr.rel (%p351) target = $region40
      $region39: #{dab_block_apply.1} parent=35 // pred_region
        _
      $region40: #{dab_block_apply.1} parent=35 // pred_fallthru
        _
    $region36: #{dab_block_apply.1} parent=5 // pred_fallthru
      _
    %p354 = scmp.le.s32.totalorder 2, %s10
    // Predicated region
    $region41: #{dab_block_apply.1} parent=5 // pred_check
      %p355 = pneg %p354
    $region42: #{dab_block_apply.1} parent=5 // pred_check_branch
      %357 = sbr.rel (%p355) target = $region44
    $region43: #{dab_block_apply.1} parent=5 // pred_region
      %s358 = ssub.s32 %s10, 2
      // Predicated region
      $region45: #{dab_block_apply.1} parent=43 // pred_check
        %p359 = pneg %p149
      $region46: #{dab_block_apply.1} parent=43 // pred_check_branch
        %361 = sbr.rel (%p359) target = $region48
      $region47: #{dab_block_apply.1} parent=43 // pred_region
        %p362 = scmp.lt.s32.totalorder %s21, 0
        %s363 = scalar_select %p362, %s21, 0
        %p364 = scmp.lt.s32.totalorder %s22, 1
        %s365 = scalar_select %p364, %s22, 1
        %s366 = smul.addr %s363, 2
        %s367 = sadd.s32 %s365, %s366
        %s368 = smul.addr %s367, 8
        %s369 = scalar_lea.vmem %s4, %s368
      $region48: #{dab_block_apply.1} parent=43 // pred_fallthru
        _
    $region44: #{dab_block_apply.1} parent=5 // pred_fallthru
      _
  $region6: #{dab_block_apply.1} parent=0 // loop_footer
    %s14 = sadd.s32 1, %s10
  $region7: #{dab_block_apply.1} parent=0 // loop_footer_branch
    %9 = sbr.rel target = $region3
  $region8: #{dab_block_apply.1} parent=0 // loop_exit
    _

</llo_original>
